<compile_context>
chip_gen: v7x
topology: tpu7x:2x2x1
jax: 0.10.0
libtpu: 0.0.40
codegen_flags: <defaults>
</compile_context>

<pallas_src>
import math

import jax
import jax.numpy as jnp
from jax.experimental import pallas as pl
from jax.experimental.pallas import tpu as pltpu


def _mlp_kernel(x_ref, w1_ref, b1_ref, w2_ref, b2_ref,
                w3_ref, b3_ref, w4_ref, b4_ref, o_ref):
    # fc1: (64, 4) @ (4, Bt) -> (64, Bt); sigmoid via tanh (EUP slot).
    z1 = jnp.dot(w1_ref[...], x_ref[...],
                 preferred_element_type=jnp.float32) + b1_ref[...]
    h1 = 0.5 * (jnp.tanh(0.5 * z1) + 1.0)

    # fc2: (16, 64) @ (64, Bt) -> (16, Bt); full-block bias + relu.
    z2 = jnp.dot(w2_ref[...], h1,
                 preferred_element_type=jnp.float32) + b2_ref[...]
    h2 = jnp.maximum(z2, 0.0)

    # fc3: (4, 16) @ (16, Bt) -> (4, Bt); full-block bias + relu.
    z3 = jnp.dot(w3_ref[...], h2,
                 preferred_element_type=jnp.float32) + b3_ref[...]
    h3 = jnp.maximum(z3, 0.0)

    # fc4: (1, 4) @ (4, Bt) -> (1, Bt); lane-dense output store.
    out = jnp.dot(w4_ref[...], h3,
                  preferred_element_type=jnp.float32) + b4_ref[...]
    o_ref[...] = out.astype(o_ref.dtype)


def _round_up(n, m):
    return ((n + m - 1) // m) * m


def custom_network_forward(x, params, *, batch_tile=2048):
    """Fused MLP forward. x: [B, 4] float32 -> [B, 1] float32 (logN)."""
    (w1, b1), (w2, b2), (w3, b3), (w4, b4) = params
    B = x.shape[0]

    # Batch tile: multiple of 128 lanes, capped at `batch_tile`.
    bt = min(_round_up(batch_tile, 128), _round_up(max(B, 1), 128))
    # Keep >= 2 grid tiles when the batch allows it, so the "parallel" axis
    # actually splits across both TensorCores on v7x (no-op on v5e/v6e).
    if B > 128:
        bt = min(bt, _round_up(pl.cdiv(B, 2), 128))
    b_pad = _round_up(B, bt)
    n_tiles = b_pad // bt

    # Transposed input, (4, b_pad): no zero-pad sublane rows, no ones row.
    x_t = jnp.zeros((4, b_pad), jnp.float32)
    x_t = x_t.at[:, :B].set(x.astype(jnp.float32).T)

    # Biases as (N, 1) columns for single-broadcast adds in the kernel.
    w1 = w1.astype(jnp.float32)
    w2 = w2.astype(jnp.float32)
    w3 = w3.astype(jnp.float32)
    w4 = w4.astype(jnp.float32)
    b1c = b1.astype(jnp.float32).reshape(64, 1)
    b2c = b2.astype(jnp.float32).reshape(16, 1)
    b3c = b3.astype(jnp.float32).reshape(4, 1)
    b4c = b4.astype(jnp.float32).reshape(1, 1)

    const = lambda i: (0, 0)   # weights / biases: VMEM-resident, DMA'd once
    out = pl.pallas_call(
        _mlp_kernel,
        out_shape=jax.ShapeDtypeStruct((1, b_pad), jnp.float32),
        grid=(n_tiles,),
        in_specs=[
            pl.BlockSpec((4, bt), lambda i: (0, i)),   # x tile (pipelined)
            pl.BlockSpec((64, 4), const),              # W1
            pl.BlockSpec((64, 1), const),              # b1
            pl.BlockSpec((16, 64), const),             # W2
            pl.BlockSpec((16, 1), const),              # b2
            pl.BlockSpec((4, 16), const),              # W3
            pl.BlockSpec((4, 1), const),               # b3
            pl.BlockSpec((1, 4), const),               # W4
            pl.BlockSpec((1, 1), const),               # b4
        ],
        out_specs=pl.BlockSpec((1, bt), lambda i: (0, i)),
        compiler_params=pltpu.CompilerParams(
            dimension_semantics=("parallel",)),
    )(x_t, w1, b1c, w2, b2c, w3, b3c, w4, b4c)

    # TODO(synk): optional bf16 I/O on v6e/v7x (keep f32 accumulation) if the
    # PINN tolerates it; kept f32 here since v5e has no bf16 VPU.
    return out[0, :B].reshape(B, 1)


def init_params(key):
    """PyTorch-style nn.Linear init: W is [out, in], b is [out]."""
    dims = [(4, 64), (64, 16), (16, 4), (4, 1)]   # (in_features, out_features)
    params = []
    for fan_in, fan_out in dims:
        key, kw, kb = jax.random.split(key, 3)
        bound = 1.0 / math.sqrt(float(fan_in))
        w = jax.random.uniform(kw, (fan_out, fan_in), jnp.float32, -bound, bound)
        b = jax.random.uniform(kb, (fan_out,), jnp.float32, -bound, bound)
        params.append((w, b))
    return params


def reference_forward(x, params):
    """Pure-JAX reference of the same forward pass (for sanity check)."""
    (w1, b1), (w2, b2), (w3, b3), (w4, b4) = params
    h = jax.nn.sigmoid(x @ w1.T + b1)
    h = jnp.maximum(h @ w2.T + b2, 0.0)
    h = jnp.maximum(h @ w3.T + b3, 0.0)
    return h @ w4.T + b4


if __name__ == "__main__":
    key = jax.random.PRNGKey(0)
    key, kx_small, kx_big = jax.random.split(key, 3)
    params = init_params(key)

    # Small-batch check (single tile).
    batch = 8
    x = jax.random.normal(kx_small, (batch, 4), dtype=jnp.float32)
    out = jax.block_until_ready(custom_network_forward(x, params))
    ref = reference_forward(x, params)
    assert out.shape == (batch, 1), out.shape
    assert jnp.allclose(out, ref, atol=1e-5, rtol=1e-5), (out, ref)

    # Multi-tile check (exercises grid > 1 and the batch-padding path).
    batch_big = 1500
    x_big = jax.random.normal(kx_big, (batch_big, 4), dtype=jnp.float32)
    out_big = jax.block_until_ready(custom_network_forward(x_big, params))
    ref_big = reference_forward(x_big, params)
    assert out_big.shape == (batch_big, 1), out_big.shape
    assert jnp.allclose(out_big, ref_big, atol=1e-5, rtol=1e-5)

    print("KERNEL_OK")
</pallas_src>

<mosaic_0001>
module attributes {stable_mosaic.version = 11 : i64} {
  func.func @_mlp_kernel(%arg0: i32, %arg1: memref<4x128xf32, #tpu.memory_space<vmem>>, %arg2: memref<64x4xf32, #tpu.memory_space<vmem>>, %arg3: memref<64x1xf32, #tpu.memory_space<vmem>>, %arg4: memref<16x64xf32, #tpu.memory_space<vmem>>, %arg5: memref<16x1xf32, #tpu.memory_space<vmem>>, %arg6: memref<4x16xf32, #tpu.memory_space<vmem>>, %arg7: memref<4x1xf32, #tpu.memory_space<vmem>>, %arg8: memref<1x4xf32, #tpu.memory_space<vmem>>, %arg9: memref<1x1xf32, #tpu.memory_space<vmem>>, %arg10: memref<1x128xf32, #tpu.memory_space<vmem>>) attributes {dimension_semantics = [#tpu.dimension_semantics<parallel>], iteration_bounds = array<i64: 1>, scalar_prefetch = 0 : i64, scratch_operands = 0 : i64, tpu.core_type = #tpu.core_type<tc>, window_params = [{transform_indices = @transform_0, window_bounds = array<i64: 4, 128>}, {pipeline_mode = #tpu.pipeline_mode<synchronous>, transform_indices = @transform_1, window_bounds = array<i64: 64, 4>}, {pipeline_mode = #tpu.pipeline_mode<synchronous>, transform_indices = @transform_2, window_bounds = array<i64: 64, 1>}, {pipeline_mode = #tpu.pipeline_mode<synchronous>, transform_indices = @transform_3, window_bounds = array<i64: 16, 64>}, {pipeline_mode = #tpu.pipeline_mode<synchronous>, transform_indices = @transform_4, window_bounds = array<i64: 16, 1>}, {pipeline_mode = #tpu.pipeline_mode<synchronous>, transform_indices = @transform_5, window_bounds = array<i64: 4, 16>}, {pipeline_mode = #tpu.pipeline_mode<synchronous>, transform_indices = @transform_6, window_bounds = array<i64: 4, 1>}, {pipeline_mode = #tpu.pipeline_mode<synchronous>, transform_indices = @transform_7, window_bounds = array<i64: 1, 4>}, {pipeline_mode = #tpu.pipeline_mode<synchronous>, transform_indices = @transform_8, window_bounds = array<i64: 1, 1>}, {transform_indices = @transform_9, window_bounds = array<i64: 1, 128>}]} {
    %c0 = arith.constant 0 : index
    %c0_0 = arith.constant 0 : index
    %0 = vector.load %arg2[%c0, %c0_0] : memref<64x4xf32, #tpu.memory_space<vmem>>, vector<64x4xf32>
    %c0_1 = arith.constant 0 : index
    %c0_2 = arith.constant 0 : index
    %1 = vector.load %arg1[%c0_1, %c0_2] : memref<4x128xf32, #tpu.memory_space<vmem>>, vector<4x128xf32>
    %cst = arith.constant dense<0.000000e+00> : vector<64x128xf32>
    %2 = tpu.matmul %0, %1, %cst {dimension_numbers = #tpu.dot_dimension_numbers<[1], [0], [0], [1], [0, 0, 1, 1], [], []>} : vector<64x4xf32>, vector<4x128xf32>, vector<64x128xf32> -> vector<64x128xf32>
    %c0_3 = arith.constant 0 : index
    %c0_4 = arith.constant 0 : index
    %3 = vector.load %arg3[%c0_3, %c0_4] : memref<64x1xf32, #tpu.memory_space<vmem>>, vector<64x1xf32>
    %4 = vector.broadcast %3 : vector<64x1xf32> to vector<64x128xf32>
    %5 = arith.addf %2, %4 : vector<64x128xf32>
    %cst_5 = arith.constant 5.000000e-01 : f32
    %6 = vector.broadcast %cst_5 : f32 to vector<64x128xf32>
    %7 = arith.mulf %6, %5 : vector<64x128xf32>
    %8 = math.tanh %7 : vector<64x128xf32>
    %cst_6 = arith.constant 1.000000e+00 : f32
    %9 = vector.broadcast %cst_6 : f32 to vector<64x128xf32>
    %10 = arith.addf %8, %9 : vector<64x128xf32>
    %cst_7 = arith.constant 5.000000e-01 : f32
    %11 = vector.broadcast %cst_7 : f32 to vector<64x128xf32>
    %12 = arith.mulf %11, %10 : vector<64x128xf32>
    %c0_8 = arith.constant 0 : index
    %c0_9 = arith.constant 0 : index
    %13 = vector.load %arg4[%c0_8, %c0_9] : memref<16x64xf32, #tpu.memory_space<vmem>>, vector<16x64xf32>
    %cst_10 = arith.constant dense<0.000000e+00> : vector<16x128xf32>
    %14 = tpu.matmul %13, %12, %cst_10 {dimension_numbers = #tpu.dot_dimension_numbers<[1], [0], [0], [1], [0, 0, 1, 1], [], []>} : vector<16x64xf32>, vector<64x128xf32>, vector<16x128xf32> -> vector<16x128xf32>
    %c0_11 = arith.constant 0 : index
    %c0_12 = arith.constant 0 : index
    %15 = vector.load %arg5[%c0_11, %c0_12] : memref<16x1xf32, #tpu.memory_space<vmem>>, vector<16x1xf32>
    %16 = vector.broadcast %15 : vector<16x1xf32> to vector<16x128xf32>
    %17 = arith.addf %14, %16 : vector<16x128xf32>
    %cst_13 = arith.constant 0.000000e+00 : f32
    %18 = vector.broadcast %cst_13 : f32 to vector<16x128xf32>
    %19 = arith.maximumf %17, %18 : vector<16x128xf32>
    %c0_14 = arith.constant 0 : index
    %c0_15 = arith.constant 0 : index
    %20 = vector.load %arg6[%c0_14, %c0_15] : memref<4x16xf32, #tpu.memory_space<vmem>>, vector<4x16xf32>
    %cst_16 = arith.constant dense<0.000000e+00> : vector<4x128xf32>
    %21 = tpu.matmul %20, %19, %cst_16 {dimension_numbers = #tpu.dot_dimension_numbers<[1], [0], [0], [1], [0, 0, 1, 1], [], []>} : vector<4x16xf32>, vector<16x128xf32>, vector<4x128xf32> -> vector<4x128xf32>
    %c0_17 = arith.constant 0 : index
    %c0_18 = arith.constant 0 : index
    %22 = vector.load %arg7[%c0_17, %c0_18] : memref<4x1xf32, #tpu.memory_space<vmem>>, vector<4x1xf32>
    %23 = vector.broadcast %22 : vector<4x1xf32> to vector<4x128xf32>
    %24 = arith.addf %21, %23 : vector<4x128xf32>
    %cst_19 = arith.constant 0.000000e+00 : f32
    %25 = vector.broadcast %cst_19 : f32 to vector<4x128xf32>
    %26 = arith.maximumf %24, %25 : vector<4x128xf32>
    %c0_20 = arith.constant 0 : index
    %c0_21 = arith.constant 0 : index
    %27 = vector.load %arg8[%c0_20, %c0_21] : memref<1x4xf32, #tpu.memory_space<vmem>>, vector<1x4xf32>
    %cst_22 = arith.constant dense<0.000000e+00> : vector<1x128xf32>
    %28 = tpu.matmul %27, %26, %cst_22 {dimension_numbers = #tpu.dot_dimension_numbers<[1], [0], [0], [1], [0, 0, 1, 1], [], []>} : vector<1x4xf32>, vector<4x128xf32>, vector<1x128xf32> -> vector<1x128xf32>
    %c0_23 = arith.constant 0 : index
    %c0_24 = arith.constant 0 : index
    %29 = vector.load %arg9[%c0_23, %c0_24] : memref<1x1xf32, #tpu.memory_space<vmem>>, vector<1x1xf32>
    %30 = vector.broadcast %29 : vector<1x1xf32> to vector<1x128xf32>
    %31 = arith.addf %28, %30 : vector<1x128xf32>
    %c0_25 = arith.constant 0 : index
    %c0_26 = arith.constant 0 : index
    %32 = vector.load %arg10[%c0_25, %c0_26] : memref<1x128xf32, #tpu.memory_space<vmem>>, vector<1x128xf32>
    tpu.vector_store %arg10[%c0_25, %c0_26], %31 {strides = array<i32>} : memref<1x128xf32, #tpu.memory_space<vmem>>, vector<1x128xf32>,
    return
  }
  func.func @transform_0(%arg0: i32) -> (i32, i32) {
    %c0_i32 = arith.constant 0 : i32
    %c0_i32_0 = arith.constant 0 : i32
    return %c0_i32, %arg0 : i32, i32
  }
  func.func @transform_1(%arg0: i32) -> (i32, i32) {
    %c0_i32 = arith.constant 0 : i32
    %c0_i32_0 = arith.constant 0 : i32
    %c0_i32_1 = arith.constant 0 : i32
    return %c0_i32, %c0_i32_0 : i32, i32
  }
  func.func @transform_2(%arg0: i32) -> (i32, i32) {
    %c0_i32 = arith.constant 0 : i32
    %c0_i32_0 = arith.constant 0 : i32
    %c0_i32_1 = arith.constant 0 : i32
    return %c0_i32, %c0_i32_0 : i32, i32
  }
  func.func @transform_3(%arg0: i32) -> (i32, i32) {
    %c0_i32 = arith.constant 0 : i32
    %c0_i32_0 = arith.constant 0 : i32
    %c0_i32_1 = arith.constant 0 : i32
    return %c0_i32, %c0_i32_0 : i32, i32
  }
  func.func @transform_4(%arg0: i32) -> (i32, i32) {
    %c0_i32 = arith.constant 0 : i32
    %c0_i32_0 = arith.constant 0 : i32
    %c0_i32_1 = arith.constant 0 : i32
    return %c0_i32, %c0_i32_0 : i32, i32
  }
  func.func @transform_5(%arg0: i32) -> (i32, i32) {
    %c0_i32 = arith.constant 0 : i32
    %c0_i32_0 = arith.constant 0 : i32
    %c0_i32_1 = arith.constant 0 : i32
    return %c0_i32, %c0_i32_0 : i32, i32
  }
  func.func @transform_6(%arg0: i32) -> (i32, i32) {
    %c0_i32 = arith.constant 0 : i32
    %c0_i32_0 = arith.constant 0 : i32
    %c0_i32_1 = arith.constant 0 : i32
    return %c0_i32, %c0_i32_0 : i32, i32
  }
  func.func @transform_7(%arg0: i32) -> (i32, i32) {
    %c0_i32 = arith.constant 0 : i32
    %c0_i32_0 = arith.constant 0 : i32
    %c0_i32_1 = arith.constant 0 : i32
    return %c0_i32, %c0_i32_0 : i32, i32
  }
  func.func @transform_8(%arg0: i32) -> (i32, i32) {
    %c0_i32 = arith.constant 0 : i32
    %c0_i32_0 = arith.constant 0 : i32
    %c0_i32_1 = arith.constant 0 : i32
    return %c0_i32, %c0_i32_0 : i32, i32
  }
  func.func @transform_9(%arg0: i32) -> (i32, i32) {
    %c0_i32 = arith.constant 0 : i32
    %c0_i32_0 = arith.constant 0 : i32
    return %c0_i32, %arg0 : i32, i32
  }
}

</mosaic_0001>

<llo_original>
// kernel: tpu_custom_call.1
$region0: #{tpu_custom_call.1}
  #allocation0 [shape = 'u32[]', space=smem, size = 0x4, offset = 0x4, fixed_abs, tag = 'smem constant byte address 0x4 - core index']
  #allocation1 [shape = 'u32[144,128]{1,0:T(1,128)}', space=vmem, size = 0x12000, scoped, tag = 'internal scratch']
  #allocation2 [shape = 'f32[1,1]{1,0:T(1,128)S(1)}', space=vmem, size = 0x200, scoped, tag = 'scoped memory for tpu_custom_call.1']
  %s0 = inlined_call_operand.vmem [shape: f32[4,128], index: 0, kind: input, shape index: {}]
  %s1 = inlined_call_operand.vmem [shape: f32[64,4], index: 1, kind: input, shape index: {}]
  %s2 = inlined_call_operand.vmem [shape: f32[64,1], index: 2, kind: input, shape index: {}]
  %s3 = inlined_call_operand.vmem [shape: f32[16,64], index: 3, kind: input, shape index: {}]
  %s4 = inlined_call_operand.vmem [shape: f32[16,1], index: 4, kind: input, shape index: {}]
  %s5 = inlined_call_operand.vmem [shape: f32[4,16], index: 5, kind: input, shape index: {}]
  %s6 = inlined_call_operand.vmem [shape: f32[4,1], index: 6, kind: input, shape index: {}]
  %s7 = inlined_call_operand.vmem [shape: f32[1,4], index: 7, kind: input, shape index: {}]
  %s8 = inlined_call_operand.<no memory space> [shape: f32[1,1], index: 8, kind: input, shape index: {}]
  %s9 = inlined_call_operand.hbm [shape: f32[1,128], index: 9, kind: output, shape index: {}]
  %s10 = sld [smem:[#allocation0]]
  $region46: #{tpu_custom_call.1} parent=0
    _
  %s12 = ssub.s32 1, %s10
  %s13 = scalar_select 0, %s12, %s10
  %v14 = vstv %s8
  %15 = vst [vmem:[#allocation2] sm:$0x1] %v14
  $region1: #{tpu_custom_call.1} parent=0
    #allocation3 [shape = 'u8[512]{0}', space=vmem, size = 0x400, scoped, tag = 'output window, operand 0, single buffered']
    #allocation4 [shape = 's32[1]{0}', space=sflag, size = 0x4, scoped, tag = 'scoped memory for tpu_custom_call.1']
    %16 = vsyncpa [#allocation4], 0
    // Predicated region
    $region2: #{tpu_custom_call.1} parent=1 // pred_check
      _
    $region3: #{tpu_custom_call.1} parent=1 // pred_check_branch
      %18 = sbr.rel (0) target = $region5
    $region4: #{tpu_custom_call.1} parent=1 // pred_region
      _
    $region5: #{tpu_custom_call.1} parent=1 // pred_fallthru
      _
    // Predicated region
    $region6: #{tpu_custom_call.1} parent=1 // pred_check
      _
    $region7: #{tpu_custom_call.1} parent=1 // pred_check_branch
      %20 = sbr.rel (0) target = $region9
    $region8: #{tpu_custom_call.1} parent=1 // pred_region
      _
    $region9: #{tpu_custom_call.1} parent=1 // pred_fallthru
      _
    // Predicated region
    $region10: #{tpu_custom_call.1} parent=1 // pred_check
      _
    $region11: #{tpu_custom_call.1} parent=1 // pred_check_branch
      %22 = sbr.rel (0) target = $region13
    $region12: #{tpu_custom_call.1} parent=1 // pred_region
      _
    $region13: #{tpu_custom_call.1} parent=1 // pred_fallthru
      _
    // Predicated region
    $region14: #{tpu_custom_call.1} parent=1 // pred_check
      _
    $region15: #{tpu_custom_call.1} parent=1 // pred_check_branch
      %24 = sbr.rel (0) target = $region17
    $region16: #{tpu_custom_call.1} parent=1 // pred_region
      _
    $region17: #{tpu_custom_call.1} parent=1 // pred_fallthru
      _
    // Predicated region
    $region18: #{tpu_custom_call.1} parent=1 // pred_check
      _
    $region19: #{tpu_custom_call.1} parent=1 // pred_check_branch
      %26 = sbr.rel (0) target = $region21
    $region20: #{tpu_custom_call.1} parent=1 // pred_region
      _
    $region21: #{tpu_custom_call.1} parent=1 // pred_fallthru
      _
    // Predicated region
    $region22: #{tpu_custom_call.1} parent=1 // pred_check
      _
    $region23: #{tpu_custom_call.1} parent=1 // pred_check_branch
      %28 = sbr.rel (0) target = $region25
    $region24: #{tpu_custom_call.1} parent=1 // pred_region
      _
    $region25: #{tpu_custom_call.1} parent=1 // pred_fallthru
      _
    // Predicated region
    $region26: #{tpu_custom_call.1} parent=1 // pred_check
      _
    $region27: #{tpu_custom_call.1} parent=1 // pred_check_branch
      %30 = sbr.rel (0) target = $region29
    $region28: #{tpu_custom_call.1} parent=1 // pred_region
      _
    $region29: #{tpu_custom_call.1} parent=1 // pred_fallthru
      _
    // Predicated region
    $region30: #{tpu_custom_call.1} parent=1 // pred_check
      _
    $region31: #{tpu_custom_call.1} parent=1 // pred_check_branch
      %32 = sbr.rel (0) target = $region33
    $region32: #{tpu_custom_call.1} parent=1 // pred_region
      _
    $region33: #{tpu_custom_call.1} parent=1 // pred_fallthru
      _
    // Predicated region
    $region34: #{tpu_custom_call.1} parent=1 // pred_check
      _
    $region35: #{tpu_custom_call.1} parent=1 // pred_check_branch
      %34 = sbr.rel (0) target = $region37
    $region36: #{tpu_custom_call.1} parent=1 // pred_region
      _
    $region37: #{tpu_custom_call.1} parent=1 // pred_fallthru
      _
    %v35 = vld [vmem:[%s1] sm:$0xff]
    %v36 = vld [vmem:[%s1 + $0x8] sm:$0xff]
    %v37 = vld [vmem:[%s1 + $0x10] sm:$0xff]
    %v38 = vld [vmem:[%s1 + $0x18] sm:$0xff]
    %v39 = vld [vmem:[%s1 + $0x20] sm:$0xff]
    %v40 = vld [vmem:[%s1 + $0x28] sm:$0xff]
    %v41 = vld [vmem:[%s1 + $0x30] sm:$0xff]
    %v42 = vld [vmem:[%s1 + $0x38] sm:$0xff]
    %v43 = vld [vmem:[%s0] sm:$0xf]
    %v44 = vld [vmem:[%s2] sm:$0xff]
    %v45 = vld [vmem:[%s2 + $0x8] sm:$0xff]
    %v46 = vld [vmem:[%s2 + $0x10] sm:$0xff]
    %v47 = vld [vmem:[%s2 + $0x18] sm:$0xff]
    %v48 = vld [vmem:[%s2 + $0x20] sm:$0xff]
    %v49 = vld [vmem:[%s2 + $0x28] sm:$0xff]
    %v50 = vld [vmem:[%s2 + $0x30] sm:$0xff]
    %v51 = vld [vmem:[%s2 + $0x38] sm:$0xff]
    %53 = vset.pattern.permute.xlu0 0
    %54 = vperm.xlu0 %53, %v44
    %v55 = vpop.permute.xlu0 %54
    %58 = vset.pattern.permute.xlu0 0
    %59 = vperm.xlu0 %58, %v45
    %v60 = vpop.permute.xlu0 %59
    %63 = vset.pattern.permute.xlu0 0
    %64 = vperm.xlu0 %63, %v46
    %v65 = vpop.permute.xlu0 %64
    %68 = vset.pattern.permute.xlu0 0
    %69 = vperm.xlu0 %68, %v47
    %v70 = vpop.permute.xlu0 %69
    %73 = vset.pattern.permute.xlu0 0
    %74 = vperm.xlu0 %73, %v48
    %v75 = vpop.permute.xlu0 %74
    %78 = vset.pattern.permute.xlu0 0
    %79 = vperm.xlu0 %78, %v49
    %v80 = vpop.permute.xlu0 %79
    %83 = vset.pattern.permute.xlu0 0
    %84 = vperm.xlu0 %83, %v50
    %v85 = vpop.permute.xlu0 %84
    %88 = vset.pattern.permute.xlu0 0
    %89 = vperm.xlu0 %88, %v51
    %v90 = vpop.permute.xlu0 %89
    %vm92 = vcmask 31744
    %v94 = vsel %vm92, %v35, 0
    %v97 = vsel %vm92, %v36, 0
    %v100 = vsel %vm92, %v37, 0
    %v103 = vsel %vm92, %v38, 0
    %v106 = vsel %vm92, %v39, 0
    %v109 = vsel %vm92, %v40, 0
    %v112 = vsel %vm92, %v41, 0
    %v115 = vsel %vm92, %v42, 0
    %vm117 = vcmask 1043456
    %v119 = vsel %vm117, %v43, 0
    %121 = vmatprep.subr.mxu0 0.0
    %122 = vmatpush1.msra.mxu0 %v119
    %123 = vmatprep.subr.mxu0 0.0
    %124 = vmatpush1.msra.mxu0 0.0
    %125 = vmatprep.subr.mxu0 0.0
    %126 = vmatpush1.msra.mxu0 0.0
    %127 = vmatprep.subr.mxu0 0.0
    %128 = vmatpush1.msra.mxu0 0.0
    %129 = vmatprep.subr.mxu0 0.0
    %130 = vmatpush1.msra.mxu0 0.0
    %131 = vmatprep.subr.mxu0 0.0
    %132 = vmatpush1.msra.mxu0 0.0
    %133 = vmatprep.subr.mxu0 0.0
    %134 = vmatpush1.msra.mxu0 0.0
    %135 = vmatprep.subr.mxu0 0.0
    %136 = vmatpush1.msra.mxu0 0.0
    %137 = vmatprep.subr.mxu0 0.0
    %138 = vmatpush1.msra.mxu0 0.0
    %139 = vmatprep.subr.mxu0 0.0
    %140 = vmatpush1.msra.mxu0 0.0
    %141 = vmatprep.subr.mxu0 0.0
    %142 = vmatpush1.msra.mxu0 0.0
    %143 = vmatprep.subr.mxu0 0.0
    %144 = vmatpush1.msra.mxu0 0.0
    %145 = vmatprep.subr.mxu0 0.0
    %146 = vmatpush1.msra.mxu0 0.0
    %147 = vmatprep.subr.mxu0 0.0
    %148 = vmatpush1.msra.mxu0 0.0
    %149 = vmatprep.subr.mxu0 0.0
    %150 = vmatpush1.msra.mxu0 0.0
    %151 = vmatprep.subr.mxu0 0.0
    %152 = vmatpush1.msra.mxu0 0.0
    %153 = vmatprep.subr.mxu0 0.0
    %154 = vmatpush1.msra.mxu0 0.0
    %155 = vmatprep.subr.mxu0 0.0
    %156 = vmatpush1.msra.mxu0 0.0
    %157 = vmatprep.subr.mxu0 0.0
    %158 = vmatpush1.msra.mxu0 0.0
    %159 = vmatprep.subr.mxu0 0.0
    %160 = vmatpush1.msra.mxu0 0.0
    %161 = vmatprep.subr.mxu0 0.0
    %162 = vmatpush1.msra.mxu0 0.0
    %163 = vmatprep.subr.mxu0 0.0
    %164 = vmatpush1.msra.mxu0 0.0
    %165 = vmatprep.subr.mxu0 0.0
    %166 = vmatpush1.msra.mxu0 0.0
    %167 = vmatprep.subr.mxu0 0.0
    %168 = vmatpush1.msra.mxu0 0.0
    %169 = vmatprep.subr.mxu0 0.0
    %170 = vmatpush1.msra.mxu0 0.0
    %171 = vmatprep.subr.mxu0 0.0
    %172 = vmatpush1.msra.mxu0 0.0
    %173 = vmatprep.subr.mxu0 0.0
    %174 = vmatpush1.msra.mxu0 0.0
    %175 = vmatprep.subr.mxu0 0.0
    %176 = vmatpush1.msra.mxu0 0.0
    %177 = vmatprep.subr.mxu0 0.0
    %178 = vmatpush1.msra.mxu0 0.0
    %179 = vmatprep.subr.mxu0 0.0
    %180 = vmatpush1.msra.mxu0 0.0
    %181 = vmatprep.subr.mxu0 0.0
    %182 = vmatpush1.msra.mxu0 0.0
    %183 = vmatprep.subr.mxu0 0.0
    %184 = vmatpush1.msra.mxu0 0.0
    %185 = vmatprep.mubr.f32.mxu0 0.0
    %186 = vmatmul.mubr.f32.gmra.mrb[0].mxu0 %v94
    %v187 = vpop.f32.mrb[0].mxu0
    %v188 = vadd.f32 %v55, %v187
    %v189 = vpop.f32.mrb[0].mxu0
    %190 = vmatprep.mubr.f32.mxu0 0.0
    %191 = vmatmul.mubr.f32.gmra.mrb[0].mxu0 %v97
    %v192 = vpop.f32.mrb[0].mxu0
    %v193 = vadd.f32 %v60, %v192
    %v194 = vpop.f32.mrb[0].mxu0
    %195 = vmatprep.mubr.f32.mxu0 0.0
    %196 = vmatmul.mubr.f32.gmra.mrb[0].mxu0 %v100
    %v197 = vpop.f32.mrb[0].mxu0
    %v198 = vadd.f32 %v65, %v197
    %v199 = vpop.f32.mrb[0].mxu0
    %200 = vmatprep.mubr.f32.mxu0 0.0
    %201 = vmatmul.mubr.f32.gmra.mrb[0].mxu0 %v103
    %v202 = vpop.f32.mrb[0].mxu0
    %v203 = vadd.f32 %v70, %v202
    %v204 = vpop.f32.mrb[0].mxu0
    %205 = vmatprep.mubr.f32.mxu0 0.0
    %206 = vmatmul.mubr.f32.gmra.mrb[0].mxu0 %v106
    %v207 = vpop.f32.mrb[0].mxu0
    %v208 = vadd.f32 %v75, %v207
    %v209 = vpop.f32.mrb[0].mxu0
    %210 = vmatprep.mubr.f32.mxu0 0.0
    %211 = vmatmul.mubr.f32.gmra.mrb[0].mxu0 %v109
    %v212 = vpop.f32.mrb[0].mxu0
    %v213 = vadd.f32 %v80, %v212
    %v214 = vpop.f32.mrb[0].mxu0
    %215 = vmatprep.mubr.f32.mxu0 0.0
    %216 = vmatmul.mubr.f32.gmra.mrb[0].mxu0 %v112
    %v217 = vpop.f32.mrb[0].mxu0
    %v218 = vadd.f32 %v85, %v217
    %v219 = vpop.f32.mrb[0].mxu0
    %220 = vmatprep.mubr.f32.mxu0 0.0
    %221 = vmatmul.mubr.f32.gmra.mrb[0].mxu0 %v115
    %v222 = vpop.f32.mrb[0].mxu0
    %v223 = vadd.f32 %v90, %v222
    %v224 = vpop.f32.mrb[0].mxu0
    %225 = vdwg.mxu0
    %v226 = vmul.f32 %v188, 0.5
    %v227 = vmul.f32 %v193, 0.5
    %v228 = vmul.f32 %v198, 0.5
    %v229 = vmul.f32 %v203, 0.5
    %v230 = vmul.f32 %v208, 0.5
    %v231 = vmul.f32 %v213, 0.5
    %v232 = vmul.f32 %v218, 0.5
    %v233 = vmul.f32 %v223, 0.5
    %v234 = vtanh.pop %v226
    %v235 = vtanh.pop %v227
    %v236 = vtanh.pop %v228
    %v237 = vtanh.pop %v229
    %v238 = vtanh.pop %v230
    %v239 = vtanh.pop %v231
    %v240 = vtanh.pop %v232
    %v241 = vtanh.pop %v233
    %v242 = vadd.f32 %v234, 1.0
    %v243 = vadd.f32 %v235, 1.0
    %v244 = vadd.f32 %v236, 1.0
    %v245 = vadd.f32 %v237, 1.0
    %v246 = vadd.f32 %v238, 1.0
    %v247 = vadd.f32 %v239, 1.0
    %v248 = vadd.f32 %v240, 1.0
    %v249 = vadd.f32 %v241, 1.0
    %v250 = vmul.f32 %v242, 0.5
    %v251 = vmul.f32 %v243, 0.5
    %v252 = vmul.f32 %v244, 0.5
    %v253 = vmul.f32 %v245, 0.5
    %v254 = vmul.f32 %v246, 0.5
    %v255 = vmul.f32 %v247, 0.5
    %v256 = vmul.f32 %v248, 0.5
    %v257 = vmul.f32 %v249, 0.5
    %v258 = vld [vmem:[%s3] sm:$0xff]
    %v259 = vld [vmem:[%s3 + $0x8] sm:$0xff]
    %v260 = vld [vmem:[%s4] sm:$0xff]
    %v261 = vld [vmem:[%s4 + $0x8] sm:$0xff]
    %263 = vset.pattern.permute.xlu0 0
    %264 = vperm.xlu0 %263, %v260
    %v265 = vpop.permute.xlu0 %264
    %268 = vset.pattern.permute.xlu0 0
    %269 = vperm.xlu0 %268, %v261
    %v270 = vpop.permute.xlu0 %269
    %vm272 = vcmask 523264
    %v274 = vsel %vm272, %v258, 0
    %v277 = vsel %vm272, %v259, 0
    %279 = vmatprep.subr.mxu0 0.0
    %280 = vmatpush1.msra.mxu0 %v250
    %281 = vmatprep.subr.mxu0 0.0
    %282 = vmatpush1.msra.mxu0 %v251
    %283 = vmatprep.subr.mxu0 0.0
    %284 = vmatpush1.msra.mxu0 %v252
    %285 = vmatprep.subr.mxu0 0.0
    %286 = vmatpush1.msra.mxu0 %v253
    %287 = vmatprep.subr.mxu0 0.0
    %288 = vmatpush1.msra.mxu0 %v254
    %289 = vmatprep.subr.mxu0 0.0
    %290 = vmatpush1.msra.mxu0 %v255
    %291 = vmatprep.subr.mxu0 0.0
    %292 = vmatpush1.msra.mxu0 %v256
    %293 = vmatprep.subr.mxu0 0.0
    %294 = vmatpush1.msra.mxu0 %v257
    %295 = vmatprep.subr.mxu0 0.0
    %296 = vmatpush1.msra.mxu0 0.0
    %297 = vmatprep.subr.mxu0 0.0
    %298 = vmatpush1.msra.mxu0 0.0
    %299 = vmatprep.subr.mxu0 0.0
    %300 = vmatpush1.msra.mxu0 0.0
    %301 = vmatprep.subr.mxu0 0.0
    %302 = vmatpush1.msra.mxu0 0.0
    %303 = vmatprep.subr.mxu0 0.0
    %304 = vmatpush1.msra.mxu0 0.0
    %305 = vmatprep.subr.mxu0 0.0
    %306 = vmatpush1.msra.mxu0 0.0
    %307 = vmatprep.subr.mxu0 0.0
    %308 = vmatpush1.msra.mxu0 0.0
    %309 = vmatprep.subr.mxu0 0.0
    %310 = vmatpush1.msra.mxu0 0.0
    %311 = vmatprep.subr.mxu0 0.0
    %312 = vmatpush1.msra.mxu0 0.0
    %313 = vmatprep.subr.mxu0 0.0
    %314 = vmatpush1.msra.mxu0 0.0
    %315 = vmatprep.subr.mxu0 0.0
    %316 = vmatpush1.msra.mxu0 0.0
    %317 = vmatprep.subr.mxu0 0.0
    %318 = vmatpush1.msra.mxu0 0.0
    %319 = vmatprep.subr.mxu0 0.0
    %320 = vmatpush1.msra.mxu0 0.0
    %321 = vmatprep.subr.mxu0 0.0
    %322 = vmatpush1.msra.mxu0 0.0
    %323 = vmatprep.subr.mxu0 0.0
    %324 = vmatpush1.msra.mxu0 0.0
    %325 = vmatprep.subr.mxu0 0.0
    %326 = vmatpush1.msra.mxu0 0.0
    %327 = vmatprep.subr.mxu0 0.0
    %328 = vmatpush1.msra.mxu0 0.0
    %329 = vmatprep.subr.mxu0 0.0
    %330 = vmatpush1.msra.mxu0 0.0
    %331 = vmatprep.subr.mxu0 0.0
    %332 = vmatpush1.msra.mxu0 0.0
    %333 = vmatprep.subr.mxu0 0.0
    %334 = vmatpush1.msra.mxu0 0.0
    %335 = vmatprep.subr.mxu0 0.0
    %336 = vmatpush1.msra.mxu0 0.0
    %337 = vmatprep.subr.mxu0 0.0
    %338 = vmatpush1.msra.mxu0 0.0
    %339 = vmatprep.subr.mxu0 0.0
    %340 = vmatpush1.msra.mxu0 0.0
    %341 = vmatprep.subr.mxu0 0.0
    %342 = vmatpush1.msra.mxu0 0.0
    %343 = vmatprep.mubr.f32.mxu0 0.0
    %344 = vmatmul.mubr.f32.gmra.mrb[0].mxu0 %v274
    %v345 = vpop.f32.mrb[0].mxu0
    %v346 = vadd.f32 %v265, %v345
    %v347 = vpop.f32.mrb[0].mxu0
    %348 = vmatprep.mubr.f32.mxu0 0.0
    %349 = vmatmul.mubr.f32.gmra.mrb[0].mxu0 %v277
    %v350 = vpop.f32.mrb[0].mxu0
    %v351 = vadd.f32 %v270, %v350
    %v352 = vpop.f32.mrb[0].mxu0
    %353 = vdwg.mxu0
    %v354 = vmax.f32 %v346, 0.0
    %v355 = vmax.f32 %v351, 0.0
    %v356 = vld [vmem:[%s5] sm:$0xf]
    %v357 = vld [vmem:[%s6] sm:$0xf]
    %359 = vset.pattern.permute.xlu0 0
    %360 = vperm.xlu0 %359, %v357
    %v361 = vpop.permute.xlu0 %360
    %vm363 = vcmask 130048
    %v365 = vsel %vm363, %v356, 0
    %367 = vmatprep.subr.mxu0 0.0
    %368 = vmatpush1.msra.mxu0 %v354
    %369 = vmatprep.subr.mxu0 0.0
    %370 = vmatpush1.msra.mxu0 %v355
    %371 = vmatprep.subr.mxu0 0.0
    %372 = vmatpush1.msra.mxu0 0.0
    %373 = vmatprep.subr.mxu0 0.0
    %374 = vmatpush1.msra.mxu0 0.0
    %375 = vmatprep.subr.mxu0 0.0
    %376 = vmatpush1.msra.mxu0 0.0
    %377 = vmatprep.subr.mxu0 0.0
    %378 = vmatpush1.msra.mxu0 0.0
    %379 = vmatprep.subr.mxu0 0.0
    %380 = vmatpush1.msra.mxu0 0.0
    %381 = vmatprep.subr.mxu0 0.0
    %382 = vmatpush1.msra.mxu0 0.0
    %383 = vmatprep.subr.mxu0 0.0
    %384 = vmatpush1.msra.mxu0 0.0
    %385 = vmatprep.subr.mxu0 0.0
    %386 = vmatpush1.msra.mxu0 0.0
    %387 = vmatprep.subr.mxu0 0.0
    %388 = vmatpush1.msra.mxu0 0.0
    %389 = vmatprep.subr.mxu0 0.0
    %390 = vmatpush1.msra.mxu0 0.0
    %391 = vmatprep.subr.mxu0 0.0
    %392 = vmatpush1.msra.mxu0 0.0
    %393 = vmatprep.subr.mxu0 0.0
    %394 = vmatpush1.msra.mxu0 0.0
    %395 = vmatprep.subr.mxu0 0.0
    %396 = vmatpush1.msra.mxu0 0.0
    %397 = vmatprep.subr.mxu0 0.0
    %398 = vmatpush1.msra.mxu0 0.0
    %399 = vmatprep.subr.mxu0 0.0
    %400 = vmatpush1.msra.mxu0 0.0
    %401 = vmatprep.subr.mxu0 0.0
    %402 = vmatpush1.msra.mxu0 0.0
    %403 = vmatprep.subr.mxu0 0.0
    %404 = vmatpush1.msra.mxu0 0.0
    %405 = vmatprep.subr.mxu0 0.0
    %406 = vmatpush1.msra.mxu0 0.0
    %407 = vmatprep.subr.mxu0 0.0
    %408 = vmatpush1.msra.mxu0 0.0
    %409 = vmatprep.subr.mxu0 0.0
    %410 = vmatpush1.msra.mxu0 0.0
    %411 = vmatprep.subr.mxu0 0.0
    %412 = vmatpush1.msra.mxu0 0.0
    %413 = vmatprep.subr.mxu0 0.0
    %414 = vmatpush1.msra.mxu0 0.0
    %415 = vmatprep.subr.mxu0 0.0
    %416 = vmatpush1.msra.mxu0 0.0
    %417 = vmatprep.subr.mxu0 0.0
    %418 = vmatpush1.msra.mxu0 0.0
    %419 = vmatprep.subr.mxu0 0.0
    %420 = vmatpush1.msra.mxu0 0.0
    %421 = vmatprep.subr.mxu0 0.0
    %422 = vmatpush1.msra.mxu0 0.0
    %423 = vmatprep.subr.mxu0 0.0
    %424 = vmatpush1.msra.mxu0 0.0
    %425 = vmatprep.subr.mxu0 0.0
    %426 = vmatpush1.msra.mxu0 0.0
    %427 = vmatprep.subr.mxu0 0.0
    %428 = vmatpush1.msra.mxu0 0.0
    %429 = vmatprep.subr.mxu0 0.0
    %430 = vmatpush1.msra.mxu0 0.0
    %431 = vmatprep.mubr.f32.mxu0 0.0
    %432 = vmatmul.mubr.f32.gmra.mrb[0].mxu0 %v365
    %v433 = vpop.f32.mrb[0].mxu0
    %v434 = vadd.f32 %v361, %v433
    %v435 = vpop.f32.mrb[0].mxu0
    %436 = vdwg.mxu0
    %v437 = vmax.f32 %v434, 0.0
    %v438 = vld [vmem:[%s7] sm:$0x1]
    %v439 = vld [vmem:[#allocation2] sm:$0x1]
    %441 = vset.pattern.permute.xlu0 0
    %442 = vperm.xlu0 %441, %v439
    %v443 = vpop.permute.xlu0 %442
    %v445 = vlaneseq
    %v446 = vshrl.u32 %v445, 7
    %v447 = vsub.s32 0, %v446
    %v448 = vrot.slane %v443, %v447
    %v450 = vsel %vm92, %v438, 0
    %v453 = vsel %vm117, %v437, 0
    %455 = vmatprep.subr.mxu0 0.0
    %456 = vmatpush1.msra.mxu0 %v453
    %457 = vmatprep.subr.mxu0 0.0
    %458 = vmatpush1.msra.mxu0 0.0
    %459 = vmatprep.subr.mxu0 0.0
    %460 = vmatpush1.msra.mxu0 0.0
    %461 = vmatprep.subr.mxu0 0.0
    %462 = vmatpush1.msra.mxu0 0.0
    %463 = vmatprep.subr.mxu0 0.0
    %464 = vmatpush1.msra.mxu0 0.0
    %465 = vmatprep.subr.mxu0 0.0
    %466 = vmatpush1.msra.mxu0 0.0
    %467 = vmatprep.subr.mxu0 0.0
    %468 = vmatpush1.msra.mxu0 0.0
    %469 = vmatprep.subr.mxu0 0.0
    %470 = vmatpush1.msra.mxu0 0.0
    %471 = vmatprep.subr.mxu0 0.0
    %472 = vmatpush1.msra.mxu0 0.0
    %473 = vmatprep.subr.mxu0 0.0
    %474 = vmatpush1.msra.mxu0 0.0
    %475 = vmatprep.subr.mxu0 0.0
    %476 = vmatpush1.msra.mxu0 0.0
    %477 = vmatprep.subr.mxu0 0.0
    %478 = vmatpush1.msra.mxu0 0.0
    %479 = vmatprep.subr.mxu0 0.0
    %480 = vmatpush1.msra.mxu0 0.0
    %481 = vmatprep.subr.mxu0 0.0
    %482 = vmatpush1.msra.mxu0 0.0
    %483 = vmatprep.subr.mxu0 0.0
    %484 = vmatpush1.msra.mxu0 0.0
    %485 = vmatprep.subr.mxu0 0.0
    %486 = vmatpush1.msra.mxu0 0.0
    %487 = vmatprep.subr.mxu0 0.0
    %488 = vmatpush1.msra.mxu0 0.0
    %489 = vmatprep.subr.mxu0 0.0
    %490 = vmatpush1.msra.mxu0 0.0
    %491 = vmatprep.subr.mxu0 0.0
    %492 = vmatpush1.msra.mxu0 0.0
    %493 = vmatprep.subr.mxu0 0.0
    %494 = vmatpush1.msra.mxu0 0.0
    %495 = vmatprep.subr.mxu0 0.0
    %496 = vmatpush1.msra.mxu0 0.0
    %497 = vmatprep.subr.mxu0 0.0
    %498 = vmatpush1.msra.mxu0 0.0
    %499 = vmatprep.subr.mxu0 0.0
    %500 = vmatpush1.msra.mxu0 0.0
    %501 = vmatprep.subr.mxu0 0.0
    %502 = vmatpush1.msra.mxu0 0.0
    %503 = vmatprep.subr.mxu0 0.0
    %504 = vmatpush1.msra.mxu0 0.0
    %505 = vmatprep.subr.mxu0 0.0
    %506 = vmatpush1.msra.mxu0 0.0
    %507 = vmatprep.subr.mxu0 0.0
    %508 = vmatpush1.msra.mxu0 0.0
    %509 = vmatprep.subr.mxu0 0.0
    %510 = vmatpush1.msra.mxu0 0.0
    %511 = vmatprep.subr.mxu0 0.0
    %512 = vmatpush1.msra.mxu0 0.0
    %513 = vmatprep.subr.mxu0 0.0
    %514 = vmatpush1.msra.mxu0 0.0
    %515 = vmatprep.subr.mxu0 0.0
    %516 = vmatpush1.msra.mxu0 0.0
    %517 = vmatprep.subr.mxu0 0.0
    %518 = vmatpush1.msra.mxu0 0.0
    %519 = vmatprep.mubr.f32.mxu0 0.0
    %520 = vmatmul.mubr.f32.gmra.mrb[0].mxu0 %v450
    %v521 = vpop.f32.mrb[0].mxu0
    %v522 = vadd.f32 %v448, %v521
    %v523 = vpop.f32.mrb[0].mxu0
    %524 = vdwg.mxu0
    %525 = vst [vmem:[#allocation3] sm:$0x1] %v522
    // Predicated region
    $region38: #{tpu_custom_call.1} parent=1 // pred_check
      _
    $region39: #{tpu_custom_call.1} parent=1 // pred_check_branch
      %527 = sbr.rel (0) target = $region41
    $region40: #{tpu_custom_call.1} parent=1 // pred_region
      %s529 = ssub.s32 16, 16
      %530 = vsyncadd [#allocation4], %s529
      %s532 = sshll.u32 [#allocation3], 4
      %s533 = int_to_ptr.vmem [resolvable:$true] %s532
      %535 = dma.vmem_to_hbm [thread:$0]  %s533, 16, %s9, [#allocation4]
    $region41: #{tpu_custom_call.1} parent=1 // pred_fallthru
      _
    // Predicated region
    $region42: #{tpu_custom_call.1} parent=1 // pred_check
      _
    $region43: #{tpu_custom_call.1} parent=1 // pred_check_branch
      %537 = sbr.rel (0) target = $region45
    $region44: #{tpu_custom_call.1} parent=1 // pred_region
      %538 = dma.done [#allocation4], 16
    $region45: #{tpu_custom_call.1} parent=1 // pred_fallthru
      _
    %539 = vsyncpa [#allocation4], 1

</llo_original>
